<compile_context>
chip_gen: v5e
topology: v5e:2x2
jax: 0.10.0
libtpu: 0.0.40
codegen_flags: <defaults>
</compile_context>

<pallas_src>
import jax
import jax.numpy as jnp
from jax.experimental import pallas as pl
from jax.experimental.pallas import tpu as pltpu


def _round_up(v, m):
    return ((v + m - 1) // m) * m


def _cdiv(a, b):
    return -(-a // b)


def _vmem_capacity_bytes():
    try:
        info = pltpu.get_tpu_info()
        cap = getattr(info, "vmem_capacity_bytes", None)
        if cap:
            return int(cap)
    except Exception:
        pass
    return 64 * 1024 * 1024  # conservative (v7x-sized) default


def _budgets(itemsize):
    """(scoped VMEM limit, per-block byte budget) for this TPU generation."""
    cap = _vmem_capacity_bytes()
    vmem_limit = max(32 * 1024 * 1024, min(int(cap * 3 // 4), 112 * 1024 * 1024))
    # per grid step: 2 input + 2 output pipeline buffers of `block` bytes plus
    # ~2 block-sized f32 temporaries from the stats upcast (worse for bf16)
    tmp_factor = 2 * max(1, 4 // itemsize)
    block_budget = vmem_limit // (4 + tmp_factor)
    return vmem_limit, block_budget


def _choose_bn(n, bn_max):
    """Largest divisor of n that is <= bn_max and keeps >= min(n, 4) grid steps."""
    target_steps = min(n, 4)
    best = 1
    for d in range(1, n + 1):
        if n % d == 0 and d <= bn_max and (n // d) >= target_steps:
            best = d
    return best


# ---------------------------------------------------------------------------
# Fused single-pass kernels: a (Bn, C, S) slab of whole samples is resident in
# VMEM, so mean/std/style-integration/BN/sigmoid/rescale happen with one HBM
# read of x and one HBM write of out.
# ---------------------------------------------------------------------------

def _make_fused_conv_kernel(s_true):
    inv_s = 1.0 / float(s_true)
    inv_sm1 = 1.0 / float(max(s_true - 1, 1))   # unbiased std (torch default)

    def kernel(x_ref, p_ref, o_ref):
        # x_ref: (Bn, C, S); p_ref: (4, C) = [w_mu; w_std; bn_a; bn_b]
        xf = x_ref[...].astype(jnp.float32)
        ssum = jnp.sum(xf, axis=-1)                      # (Bn, C)
        sqsum = jnp.sum(xf * xf, axis=-1)                # (Bn, C)
        mu = ssum * inv_s
        var = (sqsum - ssum * mu) * inv_sm1              # (sumsq - S*mu^2)/(S-1)
        std = jnp.sqrt(jnp.maximum(var, 0.0))
        p = p_ref[...]
        z = p[0:1, :] * mu + p[1:2, :] * std             # depthwise Conv1d(k=2)
        z = p[2:3, :] * z + p[3:4, :]                    # folded eval-mode BN
        scale = jax.nn.sigmoid(z)
        # re-read x from VMEM for the store path: no block-sized f32 stays live
        o_ref[...] = x_ref[...] * scale[:, :, None].astype(o_ref.dtype)

    return kernel


def _make_fused_mlp_kernel(s_true):
    inv_s = 1.0 / float(s_true)
    inv_sm1 = 1.0 / float(max(s_true - 1, 1))

    def kernel(x_ref, w1m_ref, w1s_ref, w2_ref, ab_ref, o_ref):
        # x_ref: (Bn, C, S); w1m/w1s: (C, Hd); w2: (Hd, C); ab: (2, C)
        xf = x_ref[...].astype(jnp.float32)
        ssum = jnp.sum(xf, axis=-1)
        sqsum = jnp.sum(xf * xf, axis=-1)
        mu = ssum * inv_s
        var = (sqsum - ssum * mu) * inv_sm1
        std = jnp.sqrt(jnp.maximum(var, 0.0))
        # W1 columns are pre-split (mu / std) in the wrapper -> no interleave.
        h = (jnp.dot(mu, w1m_ref[...], preferred_element_type=jnp.float32)
             + jnp.dot(std, w1s_ref[...], preferred_element_type=jnp.float32))
        h = jnp.maximum(h, 0.0)
        z = jnp.dot(h, w2_ref[...], preferred_element_type=jnp.float32)
        ab = ab_ref[...]
        z = ab[0:1, :] * z + ab[1:2, :]
        scale = jax.nn.sigmoid(z)
        o_ref[...] = x_ref[...] * scale[:, :, None].astype(o_ref.dtype)

    return kernel


# ---------------------------------------------------------------------------
# Spatially tiled two-pass fallback (sample too big for one VMEM block):
#  pass 1: per-channel sum / sum-of-squares over S tiles (output-resident acc)
#  excite: tiny (N, C) math in plain XLA
#  pass 2: lane-dense broadcast multiply
# ---------------------------------------------------------------------------

def _make_stats_kernel(s_true, t_s):
    def kernel(x_ref, sum_ref, sq_ref):
        # x_ref: (1, C, tS); outputs (1, 1, C), resident across the S grid axis
        s_idx = pl.program_id(1)

        @pl.when(s_idx == 0)
        def _():
            sum_ref[...] = jnp.zeros_like(sum_ref)
            sq_ref[...] = jnp.zeros_like(sq_ref)

        xf = x_ref[...].astype(jnp.float32)
        # mask the (possibly partial) last spatial tile: x is NOT pre-padded
        col = jax.lax.broadcasted_iota(jnp.int32, xf.shape, 2) + s_idx * t_s
        xf = jnp.where(col < s_true, xf, 0.0)
        sum_ref[...] += jnp.sum(xf, axis=-1)[None]
        sq_ref[...] += jnp.sum(xf * xf, axis=-1)[None]

    return kernel


def _apply_kernel(x_ref, scale_ref, o_ref):
    # x_ref: (1, C, tS); scale_ref: (1, C, 1)
    # OOB lanes of a partial last tile are masked by Pallas on the store.
    o_ref[...] = x_ref[...] * scale_ref[...]


# ---------------------------------------------------------------------------
# Wrapper
# ---------------------------------------------------------------------------

def srm_forward(x, *, conv_w=None, w1=None, w2=None,
                bn_gamma=None, bn_beta=None, bn_mean=None, bn_var=None,
                bn_eps=1e-5, use_mlp=False, max_block_bytes=None):
    """SRM forward. x: (N, C, H, W).

    conv_w: (C, 1, 2) depthwise Conv1d(k=2) weight  (use_mlp=False, default path)
    w1: (2C//r, 2C), w2: (C, 2C//r) Linear weights  (use_mlp=True, bias=False)
    bn_*: BatchNorm1d affine params + running stats (eval mode).
    """
    # TODO(synk): training-mode BatchNorm1d (batch statistics over z) and the
    # bias=True option of the style-integration layers are not implemented;
    # eval-mode BN with running stats and bias=False (module default) are.
    N, C, H, W = x.shape
    S = H * W
    dt = x.dtype
    itemsize = jnp.dtype(dt).itemsize
    f32 = jnp.float32

    if bn_gamma is None: bn_gamma = jnp.ones((C,), f32)
    if bn_beta is None: bn_beta = jnp.zeros((C,), f32)
    if bn_mean is None: bn_mean = jnp.zeros((C,), f32)
    if bn_var is None: bn_var = jnp.ones((C,), f32)

    # fold eval-mode BatchNorm1d into a per-channel scale/shift: z_bn = a*z + b
    a = bn_gamma.astype(f32) / jnp.sqrt(bn_var.astype(f32) + bn_eps)
    b = bn_beta.astype(f32) - bn_mean.astype(f32) * a

    vmem_limit, block_budget = _budgets(itemsize)
    if max_block_bytes is not None:
        block_budget = int(max_block_bytes)

    # VMEM footprint of one whole sample (the physical layout pads to sublane /
    # lane multiples even though no HBM-side padding is done)
    c_mult = 32 if itemsize == 1 else (16 if itemsize == 2 else 8)
    per_sample_vmem = _round_up(C, c_mult) * _round_up(S, 128) * itemsize

    x3 = x.reshape(N, C, S)

    if per_sample_vmem <= block_budget:
        # ---------------- fused single-pass path: 1 HBM read + 1 write -------
        Bn = _choose_bn(N, max(1, block_budget // per_sample_vmem))
        grid = (N // Bn,)
        x_spec = pl.BlockSpec((Bn, C, S), lambda i: (i, 0, 0))
        out_shape = jax.ShapeDtypeStruct((N, C, S), dt)
        cparams = pltpu.CompilerParams(dimension_semantics=("parallel",),
                                       vmem_limit_bytes=vmem_limit)
        cost = pl.CostEstimate(flops=6 * N * C * S,
                               transcendentals=2 * N * C,
                               bytes_accessed=2 * N * C * S * itemsize)

        if not use_mlp:
            params = jnp.stack(
                [conv_w[:, 0, 0].astype(f32), conv_w[:, 0, 1].astype(f32), a, b],
                axis=0)                                              # (4, C)
            out = pl.pallas_call(
                _make_fused_conv_kernel(S),
                out_shape=out_shape,
                grid_spec=pltpu.PrefetchScalarGridSpec(
                    num_scalar_prefetch=0, grid=grid,
                    in_specs=[x_spec,
                              pl.BlockSpec((4, C), lambda i: (0, 0))],
                    out_specs=x_spec),
                compiler_params=cparams,
                cost_estimate=cost,
            )(x3, params)
        else:
            hidden = w1.shape[0]
            # Rearrange('b c m -> b (c m)') interleaves [mu_c, std_c]; split W1
            # columns so the kernel never has to interleave.
            w1m_t = w1[:, 0::2].astype(f32).T                        # (C, Hd)
            w1s_t = w1[:, 1::2].astype(f32).T                        # (C, Hd)
            w2_t = w2.astype(f32).T                                  # (Hd, C)
            ab = jnp.stack([a, b], axis=0)                           # (2, C)
            out = pl.pallas_call(
                _make_fused_mlp_kernel(S),
                out_shape=out_shape,
                grid_spec=pltpu.PrefetchScalarGridSpec(
                    num_scalar_prefetch=0, grid=grid,
                    in_specs=[x_spec,
                              pl.BlockSpec((C, hidden), lambda i: (0, 0)),
                              pl.BlockSpec((C, hidden), lambda i: (0, 0)),
                              pl.BlockSpec((hidden, C), lambda i: (0, 0)),
                              pl.BlockSpec((2, C), lambda i: (0, 0))],
                    out_specs=x_spec),
                compiler_params=cparams,
                cost_estimate=cost,
            )(x3, w1m_t, w1s_t, w2_t, ab)
        return out.reshape(N, C, H, W)

    # ---------------- spatially tiled two-pass fallback ----------------
    c_bytes = _round_up(C, c_mult) * itemsize
    tS = max(128, (block_budget // c_bytes) // 128 * 128)
    if tS >= S:
        tS = S                      # full-extent (legal regardless of alignment)
    ns = _cdiv(S, tS)
    x_spec = pl.BlockSpec((1, C, tS), lambda i, s: (i, 0, s))
    stat_spec = pl.BlockSpec((1, 1, C), lambda i, s: (i, 0, 0))

    sums, sqs = pl.pallas_call(
        _make_stats_kernel(S, tS),
        out_shape=(jax.ShapeDtypeStruct((N, 1, C), f32),
                   jax.ShapeDtypeStruct((N, 1, C), f32)),
        grid_spec=pltpu.PrefetchScalarGridSpec(
            num_scalar_prefetch=0, grid=(N, ns),
            in_specs=[x_spec],
            out_specs=[stat_spec, stat_spec]),
        compiler_params=pltpu.CompilerParams(
            dimension_semantics=("parallel", "arbitrary"),
            vmem_limit_bytes=vmem_limit),
    )(x3)

    sums = sums.reshape(N, C)
    sqs = sqs.reshape(N, C)
    mu = sums / S
    var = jnp.maximum(sqs - sums * mu, 0.0) / max(S - 1, 1)
    std = jnp.sqrt(var)

    # tiny (N, C) excite step: plain XLA (keeps degenerate matmuls off the
    # per-tile critical path)
    if use_mlp:
        t = jnp.stack([mu, std], axis=-1).reshape(N, 2 * C)
        h = jnp.maximum(jnp.dot(t, w1.astype(f32).T, precision="highest"), 0.0)
        z = jnp.dot(h, w2.astype(f32).T, precision="highest")
    else:
        z = conv_w[:, 0, 0].astype(f32) * mu + conv_w[:, 0, 1].astype(f32) * std
    z = a * z + b
    scale = jax.nn.sigmoid(z).astype(dt).reshape(N, C, 1)

    out = pl.pallas_call(
        _apply_kernel,
        out_shape=jax.ShapeDtypeStruct((N, C, S), dt),
        grid_spec=pltpu.PrefetchScalarGridSpec(
            num_scalar_prefetch=0, grid=(N, ns),
            in_specs=[x_spec, pl.BlockSpec((1, C, 1), lambda i, s: (i, 0, 0))],
            out_specs=x_spec),
        compiler_params=pltpu.CompilerParams(
            dimension_semantics=("parallel", "parallel"),
            vmem_limit_bytes=vmem_limit),
        cost_estimate=pl.CostEstimate(flops=N * C * S, transcendentals=0,
                                      bytes_accessed=2 * N * C * S * itemsize),
    )(x3, scale)
    return out.reshape(N, C, H, W)


# ---------------------------------------------------------------------------
# Pure-JAX reference matching the PyTorch module (eval-mode BN)
# ---------------------------------------------------------------------------

def srm_ref(x, *, conv_w=None, w1=None, w2=None,
            bn_gamma=None, bn_beta=None, bn_mean=None, bn_var=None,
            bn_eps=1e-5, use_mlp=False):
    N, C, H, W = x.shape
    f32 = jnp.float32
    if bn_gamma is None: bn_gamma = jnp.ones((C,), f32)
    if bn_beta is None: bn_beta = jnp.zeros((C,), f32)
    if bn_mean is None: bn_mean = jnp.zeros((C,), f32)
    if bn_var is None: bn_var = jnp.ones((C,), f32)

    mu = jnp.mean(x, axis=(2, 3))                      # AdaptiveAvgPool2d(1)
    std = jnp.std(x, axis=(2, 3), ddof=1)              # torch.std: unbiased
    if use_mlp:
        t = jnp.stack([mu, std], axis=-1).reshape(N, 2 * C)   # interleaved (c, metric)
        h = jnp.maximum(jnp.dot(t, w1.T, precision="highest"), 0.0)
        z = jnp.dot(h, w2.T, precision="highest")
    else:
        z = conv_w[:, 0, 0] * mu + conv_w[:, 0, 1] * std      # depthwise Conv1d(k=2)
    z = (z - bn_mean) / jnp.sqrt(bn_var + bn_eps) * bn_gamma + bn_beta
    scale = jax.nn.sigmoid(z)[:, :, None, None]
    return scale * x


if __name__ == "__main__":
    key = jax.random.PRNGKey(0)
    ks = jax.random.split(key, 9)

    N, C, H, W = 4, 6, 10, 10            # odd C / S=100 (not lane-aligned)
    r = 4
    hidden = 2 * C // r                  # = 3

    x = jax.random.normal(ks[0], (N, C, H, W), jnp.float32)
    conv_w = 0.5 * jax.random.normal(ks[1], (C, 1, 2), jnp.float32)    # Conv1d(C,C,2,groups=C)
    w1 = 0.4 * jax.random.normal(ks[2], (hidden, 2 * C), jnp.float32)  # Linear(2C, 2C//r)
    w2 = 0.4 * jax.random.normal(ks[3], (C, hidden), jnp.float32)      # Linear(2C//r, C)
    bn = dict(
        bn_gamma=1.0 + 0.1 * jax.random.normal(ks[4], (C,), jnp.float32),
        bn_beta=0.1 * jax.random.normal(ks[5], (C,), jnp.float32),
        bn_mean=0.1 * jax.random.normal(ks[6], (C,), jnp.float32),
        bn_var=jnp.abs(jax.random.normal(ks[7], (C,), jnp.float32)) + 0.5,
        bn_eps=1e-5,
    )

    # default path: depthwise Conv1d style integration, fused single-pass kernel
    out = jax.block_until_ready(srm_forward(x, conv_w=conv_w, use_mlp=False, **bn))
    ref = srm_ref(x, conv_w=conv_w, use_mlp=False, **bn)
    assert jnp.allclose(out, ref, rtol=1e-4, atol=1e-5), "fused conv path mismatch"

    # use_mlp=True path, fused kernel
    out = jax.block_until_ready(srm_forward(x, w1=w1, w2=w2, use_mlp=True, **bn))
    ref = srm_ref(x, w1=w1, w2=w2, use_mlp=True, **bn)
    assert jnp.allclose(out, ref, rtol=1e-4, atol=1e-5), "fused mlp path mismatch"

    # force the spatially tiled two-pass fallback; S=169 is not a multiple of the
    # 128-lane tile, so the in-kernel iota mask and masked stores are exercised
    x2 = jax.random.normal(ks[8], (2, C, 13, 13), jnp.float32)
    out = jax.block_until_ready(
        srm_forward(x2, conv_w=conv_w, use_mlp=False, max_block_bytes=4096, **bn))
    ref = srm_ref(x2, conv_w=conv_w, use_mlp=False, **bn)
    assert jnp.allclose(out, ref, rtol=1e-4, atol=1e-4), "tiled conv path mismatch"

    out = jax.block_until_ready(
        srm_forward(x2, w1=w1, w2=w2, use_mlp=True, max_block_bytes=4096, **bn))
    ref = srm_ref(x2, w1=w1, w2=w2, use_mlp=True, **bn)
    assert jnp.allclose(out, ref, rtol=1e-4, atol=1e-4), "tiled mlp path mismatch"

    print("KERNEL_OK")
</pallas_src>

<mosaic_0001>
module attributes {stable_mosaic.version = 11 : i64} {
  func.func @kernel(%arg0: i32, %arg1: memref<1x6x100xf32, #tpu.memory_space<vmem>>, %arg2: memref<4x6xf32, #tpu.memory_space<vmem>>, %arg3: memref<1x6x100xf32, #tpu.memory_space<vmem>>) attributes {dimension_semantics = [#tpu.dimension_semantics<parallel>], iteration_bounds = array<i64: 4>, scalar_prefetch = 0 : i64, scratch_operands = 0 : i64, tpu.core_type = #tpu.core_type<tc>, window_params = [{transform_indices = @transform_0, window_bounds = array<i64: 1, 6, 100>}, {pipeline_mode = #tpu.pipeline_mode<synchronous>, transform_indices = @transform_1, window_bounds = array<i64: 4, 6>}, {transform_indices = @transform_2, window_bounds = array<i64: 1, 6, 100>}]} {
    %c0 = arith.constant 0 : index
    %c0_0 = arith.constant 0 : index
    %c0_1 = arith.constant 0 : index
    %0 = vector.load %arg1[%c0, %c0_0, %c0_1] : memref<1x6x100xf32, #tpu.memory_space<vmem>>, vector<1x6x100xf32>
    %cst = arith.constant dense<0.000000e+00> : vector<1x6xf32>
    %1 = vector.multi_reduction <add>, %0, %cst [2] : vector<1x6x100xf32> to vector<1x6xf32>
    %2 = arith.mulf %0, %0 : vector<1x6x100xf32>
    %cst_2 = arith.constant dense<0.000000e+00> : vector<1x6xf32>
    %3 = vector.multi_reduction <add>, %2, %cst_2 [2] : vector<1x6x100xf32> to vector<1x6xf32>
    %cst_3 = arith.constant 0.00999999977 : f32
    %4 = vector.broadcast %cst_3 : f32 to vector<1x6xf32>
    %5 = arith.mulf %1, %4 : vector<1x6xf32>
    %6 = arith.mulf %1, %5 : vector<1x6xf32>
    %7 = arith.subf %3, %6 : vector<1x6xf32>
    %cst_4 = arith.constant 0.0101010101 : f32
    %8 = vector.broadcast %cst_4 : f32 to vector<1x6xf32>
    %9 = arith.mulf %7, %8 : vector<1x6xf32>
    %cst_5 = arith.constant 0.000000e+00 : f32
    %10 = vector.broadcast %cst_5 : f32 to vector<1x6xf32>
    %11 = arith.maximumf %9, %10 : vector<1x6xf32>
    %12 = math.sqrt %11 : vector<1x6xf32>
    %c0_6 = arith.constant 0 : index
    %c0_7 = arith.constant 0 : index
    %13 = vector.load %arg2[%c0_6, %c0_7] : memref<4x6xf32, #tpu.memory_space<vmem>>, vector<4x6xf32>
    %14 = vector.extract_strided_slice %13 {offsets = [0, 0], sizes = [1, 6], strides = [1, 1]} : vector<4x6xf32> to vector<1x6xf32>
    %15 = arith.mulf %14, %5 : vector<1x6xf32>
    %16 = vector.extract_strided_slice %13 {offsets = [1, 0], sizes = [1, 6], strides = [1, 1]} : vector<4x6xf32> to vector<1x6xf32>
    %17 = arith.mulf %16, %12 : vector<1x6xf32>
    %18 = arith.addf %15, %17 : vector<1x6xf32>
    %19 = vector.extract_strided_slice %13 {offsets = [2, 0], sizes = [1, 6], strides = [1, 1]} : vector<4x6xf32> to vector<1x6xf32>
    %20 = arith.mulf %19, %18 : vector<1x6xf32>
    %21 = vector.extract_strided_slice %13 {offsets = [3, 0], sizes = [1, 6], strides = [1, 1]} : vector<4x6xf32> to vector<1x6xf32>
    %22 = arith.addf %20, %21 : vector<1x6xf32>
    %23 = arith.negf %22 : vector<1x6xf32>
    %24 = math.exp %23 : vector<1x6xf32>
    %cst_8 = arith.constant 1.000000e+00 : f32
    %25 = vector.broadcast %cst_8 : f32 to vector<1x6xf32>
    %26 = arith.addf %25, %24 : vector<1x6xf32>
    %27 = arith.divf %25, %26 : vector<1x6xf32>
    %c0_9 = arith.constant 0 : index
    %c0_10 = arith.constant 0 : index
    %c0_11 = arith.constant 0 : index
    %28 = vector.load %arg1[%c0_9, %c0_10, %c0_11] : memref<1x6x100xf32, #tpu.memory_space<vmem>>, vector<1x6x100xf32>
    %29 = vector.shape_cast %27 : vector<1x6xf32> to vector<1x6x1xf32>
    %30 = vector.broadcast %29 : vector<1x6x1xf32> to vector<1x6x100xf32>
    %31 = arith.mulf %28, %30 : vector<1x6x100xf32>
    %c0_12 = arith.constant 0 : index
    %c0_13 = arith.constant 0 : index
    %c0_14 = arith.constant 0 : index
    %32 = vector.load %arg3[%c0_12, %c0_13, %c0_14] : memref<1x6x100xf32, #tpu.memory_space<vmem>>, vector<1x6x100xf32>
    tpu.vector_store %arg3[%c0_12, %c0_13, %c0_14], %31 {strides = array<i32>} : memref<1x6x100xf32, #tpu.memory_space<vmem>>, vector<1x6x100xf32>,
    return
  }
  func.func @transform_0(%arg0: i32) -> (i32, i32, i32) {
    %c0_i32 = arith.constant 0 : i32
    %c0_i32_0 = arith.constant 0 : i32
    %c0_i32_1 = arith.constant 0 : i32
    return %arg0, %c0_i32, %c0_i32_0 : i32, i32, i32
  }
  func.func @transform_1(%arg0: i32) -> (i32, i32) {
    %c0_i32 = arith.constant 0 : i32
    %c0_i32_0 = arith.constant 0 : i32
    %c0_i32_1 = arith.constant 0 : i32
    return %c0_i32, %c0_i32_0 : i32, i32
  }
  func.func @transform_2(%arg0: i32) -> (i32, i32, i32) {
    %c0_i32 = arith.constant 0 : i32
    %c0_i32_0 = arith.constant 0 : i32
    %c0_i32_1 = arith.constant 0 : i32
    return %arg0, %c0_i32, %c0_i32_0 : i32, i32, i32
  }
}

</mosaic_0001>

<llo_original>
// kernel: tpu_custom_call.1
$region0: #{tpu_custom_call.1}
  #allocation0 [shape = 'u32[]', space=smem, size = 0x4, offset = 0x4, fixed_abs, tag = 'smem constant byte address 0x4 - core index']
  #allocation1 [shape = 'u32[72,128]{1,0:T(1,128)}', space=vmem, size = 0x9000, scoped, tag = 'internal scratch']
  %s0 = inlined_call_operand.vmem [shape: f32[4,6,100], index: 0, kind: input, shape index: {}]
  %s1 = inlined_call_operand.vmem [shape: f32[4,6], index: 1, kind: input, shape index: {}]
  %s2 = inlined_call_operand.vmem [shape: f32[4,6,100], index: 2, kind: output, shape index: {}]
  %s3 = sld [smem:[#allocation0]]
  $region41: #{tpu_custom_call.1} parent=0
    _
  %s5 = ssub.s32 1, %s3
  %s6 = scalar_select 0, %s5, %s3
  loop: start=0, step=1, limit=6
  $region2: #{tpu_custom_call.1} parent=0 // loop_pre_header
    _
  $region3: #{tpu_custom_call.1} parent=0 // loop_header
    %s8 = sphi 0, %s12
    %p9 = scmp.ge.s32.totalorder %s8, 6
    %s18 = sphi 0, %s20
    %s21 = sphi 0, %s18
    %s22 = sphi 0, %s21
    %s38 = sphi 0, %s22
    %s42 = sphi 0, %s42
    %s44 = sphi 0, %s42
    %s45 = sphi 0, %s44
    %s59 = sphi 0, %s45
    %s65 = sphi 0, %s67
    %s68 = sphi 0, %s65
    %s69 = sphi 0, %s68
    %s85 = sphi 0, %s69
  $region4: #{tpu_custom_call.1} parent=0 // loop_header_branch
    %11 = sbr.rel (%p9) target = $region8
  $region5: #{tpu_custom_call.1} parent=0 // loop_body
    %s13 = ssub.s32 %s8, 1
    %s14 = ssub.s32 %s8, 2
    %s15 = sadd.s32 %s8, 1
    %s16 = ssub.s32 %s8, %s15
    %p17 = scmp.eq.s32.totalorder %s16, 0
    %s19 = sadd.s32 %s18, 1
    %s20 = scalar_select %p17, %s18, %s19
    %p23 = pneg %p17
    %p24 = scmp.eq.s32.totalorder %s8, 3
    %p25 = por %p23, %p24
    %p26 = scmp.ne.s32.totalorder %s18, %s21
    %p27 = scmp.eq.s32.totalorder %s8, 0
    %p28 = por %p26, %p27
    %p29 = scmp.ne.s32.totalorder %s18, %s21
    %p30 = scmp.eq.s32.totalorder %s13, 3
    %p31 = por %p29, %p30
    %p32 = scmp.ne.s32.totalorder %s21, %s22
    %p33 = scmp.eq.s32.totalorder %s13, 0
    %p34 = por %p32, %p33
    %p35 = scmp.ne.s32.totalorder %s21, %s22
    %p36 = scmp.eq.s32.totalorder %s14, 3
    %p37 = por %p35, %p36
    %p39 = scmp.ne.s32.totalorder %s22, %s38
    %p40 = scmp.eq.s32.totalorder %s14, 0
    %p41 = por %p39, %p40
    %s43 = sadd.s32 %s42, 1
    %p46 = scmp.eq.s32.totalorder %s8, 3
    %p47 = scmp.ne.s32.totalorder %s42, %s44
    %p48 = scmp.eq.s32.totalorder %s8, 0
    %p49 = por %p47, %p48
    %p50 = scmp.ne.s32.totalorder %s42, %s44
    %p51 = scmp.eq.s32.totalorder %s13, 3
    %p52 = por %p50, %p51
    %p53 = scmp.ne.s32.totalorder %s44, %s45
    %p54 = scmp.eq.s32.totalorder %s13, 0
    %p55 = por %p53, %p54
    %p56 = scmp.ne.s32.totalorder %s44, %s45
    %p57 = scmp.eq.s32.totalorder %s14, 3
    %p58 = por %p56, %p57
    %p60 = scmp.ne.s32.totalorder %s45, %s59
    %p61 = scmp.eq.s32.totalorder %s14, 0
    %p62 = por %p60, %p61
    %s63 = ssub.s32 %s8, %s15
    %p64 = scmp.eq.s32.totalorder %s63, 0
    %s66 = sadd.s32 %s65, 1
    %s67 = scalar_select %p64, %s65, %s66
    %p70 = pneg %p64
    %p71 = scmp.eq.s32.totalorder %s8, 3
    %p72 = por %p70, %p71
    %p73 = scmp.ne.s32.totalorder %s65, %s68
    %p74 = scmp.eq.s32.totalorder %s8, 0
    %p75 = por %p73, %p74
    %p76 = scmp.ne.s32.totalorder %s65, %s68
    %p77 = scmp.eq.s32.totalorder %s13, 3
    %p78 = por %p76, %p77
    %p79 = scmp.ne.s32.totalorder %s68, %s69
    %p80 = scmp.eq.s32.totalorder %s13, 0
    %p81 = por %p79, %p80
    %p82 = scmp.ne.s32.totalorder %s68, %s69
    %p83 = scmp.eq.s32.totalorder %s14, 3
    %p84 = por %p82, %p83
    %p86 = scmp.ne.s32.totalorder %s69, %s85
    %p87 = scmp.eq.s32.totalorder %s14, 0
    %p88 = por %p86, %p87
    %p89 = scmp.le.s32.totalorder 1, %s8
    %p90 = scmp.lt.s32.totalorder %s8, 5
    %p91 = pnand %p89, %p90
    %p92 = pneg %p91
    // Predicated region
    $region9: #{tpu_custom_call.1} parent=5 // pred_check
      _
    $region10: #{tpu_custom_call.1} parent=5 // pred_check_branch
      %94 = sbr.rel (%p91) target = $region12
    $region11: #{tpu_custom_call.1} parent=5 // pred_region
      %s95 = ssub.s32 %s8, 1
      // Predicated region
      $region13: #{tpu_custom_call.1} parent=11 // pred_check
        %p96 = pneg %p55
      $region14: #{tpu_custom_call.1} parent=11 // pred_check_branch
        %98 = sbr.rel (%p96) target = $region16
      $region15: #{tpu_custom_call.1} parent=11 // pred_region
        _
      $region16: #{tpu_custom_call.1} parent=11 // pred_fallthru
        _
    $region12: #{tpu_custom_call.1} parent=5 // pred_fallthru
      _
    %p99 = scmp.lt.s32.totalorder %s8, 4
    // Predicated region
    $region17: #{tpu_custom_call.1} parent=5 // pred_check
      %p100 = pneg %p99
    $region18: #{tpu_custom_call.1} parent=5 // pred_check_branch
      %102 = sbr.rel (%p100) target = $region20
    $region19: #{tpu_custom_call.1} parent=5 // pred_region
      // Predicated region
      $region21: #{tpu_custom_call.1} parent=19 // pred_check
        %p103 = pneg %p28
      $region22: #{tpu_custom_call.1} parent=19 // pred_check_branch
        %105 = sbr.rel (%p103) target = $region24
      $region23: #{tpu_custom_call.1} parent=19 // pred_region
        %p106 = scmp.lt.s32.totalorder %s8, 3
        %s107 = scalar_select %p106, %s8, 3
        %s108 = smul.addr %s107, 8
        %s109 = scalar_lea.vmem %s0, %s108
      $region24: #{tpu_custom_call.1} parent=19 // pred_fallthru
        _
    $region20: #{tpu_custom_call.1} parent=5 // pred_fallthru
      _
    %p110 = scmp.le.s32.totalorder 1, %s8
    %p111 = scmp.lt.s32.totalorder %s8, 5
    %p112 = pnand %p110, %p111
    %p113 = pneg %p112
    // Predicated region
    $region25: #{tpu_custom_call.1} parent=5 // pred_check
      _
    $region26: #{tpu_custom_call.1} parent=5 // pred_check_branch
      %115 = sbr.rel (%p112) target = $region28
    $region27: #{tpu_custom_call.1} parent=5 // pred_region
      %s116 = ssub.s32 %s8, 1
      %p117 = scmp.lt.s32.totalorder %s13, 3
      %s118 = scalar_select %p117, %s13, 3
      %s119 = smul.addr %s118, 8
      %s120 = scalar_lea.vmem %s0, %s119
      %p121 = pneg %p34
      %p122 = pneg %p31
      %p123 = pneg %p55
      %p124 = pneg %p52
      %p125 = pneg %p81
      %p126 = pneg %p78
      %p127 = scmp.lt.s32.totalorder %s13, 3
      %s128 = scalar_select %p127, %s13, 3
      %s129 = smul.addr %s128, 8
      %s130 = scalar_lea.vmem %s2, %s129
      %p131 = scmp.lt.s32.totalorder %s13, 3
      %s132 = scalar_select %p131, %s13, 3
      %s133 = smul.addr %s132, 8
      %s134 = scalar_lea.vmem %s0, %s133
      %p135 = scmp.lt.s32.totalorder %s13, 3
      %s136 = scalar_select %p135, %s13, 3
      %s137 = smul.addr %s136, 8
      %s138 = scalar_lea.vmem %s2, %s137
      %v139 = vld [vmem:[%s134] sm:$0x3f]
      %vm140 = vcmask 816128
      %v141 = vsel %vm140, %v139, 0.0
      %142 = vadd.xlane.f32.xlu0 %v141
      %v143 = vpop.xlane.xlu0 %142
      %v144 = vmul.f32 %v139, %v139
      %v145 = vsel %vm140, %v144, 0.0
      %146 = vadd.xlane.f32.xlu0 %v145
      %v147 = vpop.xlane.xlu0 %146
      %v148 = vmul.f32 %v143, 0.01
      %v149 = vmul.f32 %v143, %v148
      %v150 = vsub.f32 %v147, %v149
      %v151 = vmul.f32 %v150, 0.01010101
      %v152 = vmax.f32 %v151, 0.0
      %v153 = vrsqrt.pop %v152
      %v154 = vmul.f32 %v153, %v152
      %v155 = vmul.f32 %v154, %v153
      %v156 = vmul.f32 0.5, %v155
      %v157 = vsub.f32 1.5, %v156
      %v158 = vmul.f32 %v153, %v157
      %v159 = vmul.f32 %v152, %v158
      %vm160 = vcmp.eq.f32.partialorder %v152, inf
      %v161 = vsel %vm160, %v152, %v159
      %vm162 = vcmp.eq.f32.partialorder %v152, 0.0
      %v163 = vand.u32 %v152, 2147483648
      %v164 = vsel %vm162, %v163, %v161
      %v165 = vld [vmem:[%s1] sm:$0xf]
      %v167 = vlaneseq
      %v168 = vand.u32 %v167, 127
      %v169 = vperm.slane %v148, %v168
      %v171 = vmul.f32 %v165, %v169
      %v173 = vperm.slane %v164, %v168
      %v175 = vmul.f32 %v165, %v173
      %v177 = vrot.slane %v175, 1
      %v179 = vadd.f32 %v171, %v177
      %v181 = vrot.slane %v179, 6
      %v183 = vmul.f32 %v165, %v181
      %v185 = vrot.slane %v165, 1
      %v187 = vadd.f32 %v183, %v185
      %v188 = vxor.u32 %v187, 2147483648
      %v189 = vmul.f32 %v188, 1.442695
      %v190 = vpow.pop %v189
      %v191 = vadd.f32 %v190, 1.0
      %v192 = vrcp.pop %v191
      %v193 = vmul.f32 %v191, %v192
      %v194 = vsub.f32 1.0, %v193
      %v195 = vmul.f32 %v192, %v194
      %v196 = vadd.f32 %v192, %v195
      %vm197 = vweird.f32 %v191
      %vm198 = vweird.f32 %v192
      %vm199 = vmor %vm197, %vm198
      %v200 = vsel %vm199, %v192, %v196
      %v201 = vand.u32 2147483647, %v191
      %vm202 = vcmp.eq.f32.partialorder %v201, 8.507059e+37
      %v203 = vand.u32 %v191, 2147483648
      %v204 = vor.u32 1.1754944e-38, %v203
      %v205 = vsel %vm202, %v204, %v200
      %v206 = vmul.f32 1.0, %v205
      %v207 = vperm.slane %v206, 2
      %v208 = vlaneseq
      %v209 = vshrl.u32 %v208, 7
      %211 = vset.pattern.permute.xlu0 %v209
      %212 = vperm.xlu0 %211, %v207
      %v213 = vpop.permute.xlu0 %212
      %v214 = vmul.f32 %v139, %v213
      %215 = vst.msk [vmem:[%s138] sm:$0x3f] %vm140, %v214
      %p216 = scmp.lt.s32.totalorder %s13, 3
      %s217 = scalar_select %p216, %s13, 3
      %s218 = smul.addr %s217, 8
      %s219 = scalar_lea.vmem %s2, %s218
      // Predicated region
      $region29: #{tpu_custom_call.1} parent=27 // pred_check
        %p220 = pneg %p78
      $region30: #{tpu_custom_call.1} parent=27 // pred_check_branch
        %222 = sbr.rel (%p220) target = $region32
      $region31: #{tpu_custom_call.1} parent=27 // pred_region
        _
      $region32: #{tpu_custom_call.1} parent=27 // pred_fallthru
        _
    $region28: #{tpu_custom_call.1} parent=5 // pred_fallthru
      _
    %p223 = scmp.le.s32.totalorder 2, %s8
    // Predicated region
    $region33: #{tpu_custom_call.1} parent=5 // pred_check
      %p224 = pneg %p223
    $region34: #{tpu_custom_call.1} parent=5 // pred_check_branch
      %226 = sbr.rel (%p224) target = $region36
    $region35: #{tpu_custom_call.1} parent=5 // pred_region
      %s227 = ssub.s32 %s8, 2
      // Predicated region
      $region37: #{tpu_custom_call.1} parent=35 // pred_check
        %p228 = pneg %p84
      $region38: #{tpu_custom_call.1} parent=35 // pred_check_branch
        %230 = sbr.rel (%p228) target = $region40
      $region39: #{tpu_custom_call.1} parent=35 // pred_region
        %p231 = scmp.lt.s32.totalorder %s14, 3
        %s232 = scalar_select %p231, %s14, 3
        %s233 = smul.addr %s232, 8
        %s234 = scalar_lea.vmem %s2, %s233
      $region40: #{tpu_custom_call.1} parent=35 // pred_fallthru
        _
    $region36: #{tpu_custom_call.1} parent=5 // pred_fallthru
      _
  $region6: #{tpu_custom_call.1} parent=0 // loop_footer
    %s12 = sadd.s32 1, %s8
  $region7: #{tpu_custom_call.1} parent=0 // loop_footer_branch
    %7 = sbr.rel target = $region3
  $region8: #{tpu_custom_call.1} parent=0 // loop_exit
    _

</llo_original>
